<compile_context>
chip_gen: v6e
topology: v6e:2x2x1
jax: 0.10.0
libtpu: 0.0.40
codegen_flags: <defaults>
</compile_context>

<pallas_src>
import jax
import jax.numpy as jnp
from jax.experimental import pallas as pl
from jax.experimental.pallas import tpu as pltpu

_KS = 4   # state size        (phi is 4x4)
_MS = 2   # measurement size  (psi is 2x4)

# Fixed module parameters (hard-coded in KalmanFilter.__init__).
_PHI = jnp.array([[0.4, 0.2, 0.1, 0.1],
                  [0.4, 0.2, 0.1, 0.1],
                  [0.4, 0.2, 0.1, 0.1],
                  [0.4, 0.2, 0.1, 0.1]], jnp.float32)
_PSI = jnp.array([[0.23, 0.3, 0.4, 0.1],
                  [0.23, 0.3, 0.4, 0.1]], jnp.float32)


def _build_consts():
    """Constant slab (built ONCE, never re-packed per call).

    rows 0:4   phi    (4,4)   lanes 0:4
    rows 4:8   phi.T  (4,4)   lanes 0:4
    rows 8:10  psi    (2,4)   lanes 0:4
    rows 10:14 psi.T  (4,2)   lanes 0:2
    """
    c = jnp.zeros((16, 128), jnp.float32)
    c = c.at[0:4, 0:4].set(_PHI)
    c = c.at[4:8, 0:4].set(_PHI.T)
    c = c.at[8:10, 0:4].set(_PSI)
    c = c.at[10:14, 0:2].set(_PSI.T)
    return c


_CONSTS = _build_consts()


def _mm(a, b, kdim):
    """a @ b via unrolled rank-1 VPU multiply-adds (contraction dim <= 4)."""
    acc = a[:, 0:1] * b[0:1, :]
    for k in range(1, kdim):
        acc = acc + a[:, k:k + 1] * b[k:k + 1, :]
    return acc


def _kalman_kernel(c_ref, d_ref, o_ref):
    ks = _KS
    # ---- constants (lane offset 0, sublane-offset packed) ----
    phi  = c_ref[0:4, 0:4]       # (4,4)
    phiT = c_ref[4:8, 0:4]       # (4,4)
    psi  = c_ref[8:10, 0:4]      # (2,4)
    psiT = c_ref[10:14, 0:2]     # (4,2)
    # ---- per-call data ----
    H = d_ref[0:4, 0:4]          # (4,4)
    N = d_ref[4:6, 0:2]          # (2,2)
    z = d_ref[6:8, :]            # (2, Lp)  tracks batched along lanes
    g = d_ref[8:12, :]           # (4, Lp)

    # g_predict = phi @ g ; H_predict = phi @ H @ phi.T
    g_pred = _mm(phi, g, ks)                     # (4, Lp)
    H_pred = _mm(_mm(phi, H, ks), phiT, ks)      # (4, 4)

    # t_4 = psi @ H_predict (reused), t_2 = t_4 @ psi.T + N
    t4 = _mm(psi, H_pred, ks)                    # (2, 4)
    t2 = _mm(t4, psiT, ks) + N                   # (2, 2)

    # Direct 2x2 adjugate inverse (no trace reductions, matches t_2.inverse()).
    t00 = t2[0:1, 0:1]
    t01 = t2[0:1, 1:2]
    t10 = t2[1:2, 0:1]
    t11 = t2[1:2, 1:2]
    det = t00 * t11 - t01 * t10                  # (1,1)
    inv_det = pl.reciprocal(det, approx=False)   # exact f32 (covariance path)

    # K = H_predict @ psi.T @ inv(t_2); keep K as its two columns so every
    # use of K is just two rank-1 broadcasts (no concat, no extra matmul).
    M = _mm(H_pred, psiT, ks)                    # (4, 2)
    k0 = (M[:, 0:1] * t11 - M[:, 1:2] * t10) * inv_det   # (4,1)
    k1 = (M[:, 1:2] * t00 - M[:, 0:1] * t01) * inv_det   # (4,1)

    # g_update = g_predict + K @ (z - psi @ g_predict)
    innov = z - _mm(psi, g_pred, ks)             # (2, Lp)
    g_upd = g_pred + k0 * innov[0:1, :] + k1 * innov[1:2, :]   # (4, Lp)
    # H_update = H_predict - K @ (psi @ H_predict)
    H_upd = H_pred - (k0 * t4[0:1, :] + k1 * t4[1:2, :])       # (4, 4)
    # z_update = psi @ g_update
    z_upd = _mm(psi, g_upd, ks)                  # (2, Lp)

    # Single merged output tile: one writeback DMA, lane-dense rows for g/z.
    o_ref[...] = jnp.zeros_like(o_ref)
    o_ref[0:4, :] = g_upd
    o_ref[4:6, :] = z_upd
    o_ref[8:12, 0:4] = H_upd


@jax.jit
def kalman_filter(z, N, g, H):
    """Semantically equivalent to KalmanFilter.forward(z, N, g, H).

    z: (2, B) measurements, g: (4, B) state means (B tracks batched along the
    lane axis; B=1 reproduces the canonical single-track usage), N: (2, 2),
    H: (4, 4).  Returns (g_update (4,B), H_update (4,4), z_update (2,B)).
    """
    nc = g.shape[1]
    lp = max(128, ((nc + 127) // 128) * 128)
    f32 = jnp.float32

    # Per-call packing touches ONLY z, N, g, H (sublane-offset packing).
    data = jnp.zeros((16, lp), f32)
    data = data.at[0:4, 0:4].set(H.astype(f32))
    data = data.at[4:6, 0:2].set(N.astype(f32))
    data = data.at[6:8, 0:nc].set(z.astype(f32))
    data = data.at[8:12, 0:nc].set(g.astype(f32))

    vmem = pl.BlockSpec(memory_space=pltpu.MemorySpace.VMEM)
    out = pl.pallas_call(
        _kalman_kernel,
        out_shape=jax.ShapeDtypeStruct((16, lp), f32),
        in_specs=[vmem, vmem],
        out_specs=vmem,
    )(_CONSTS, data)

    g_upd = out[0:4, 0:nc]
    z_upd = out[4:6, 0:nc]
    H_upd = out[8:12, 0:4]
    return g_upd, H_upd, z_upd


# -------------------- pure-JAX reference for verification --------------------

def kalman_filter_ref(z, N, g, H):
    phi, psi = _PHI, _PSI
    g_pred = phi @ g
    H_pred = phi @ H @ phi.T
    t2 = psi @ H_pred @ psi.T + N
    K = H_pred @ psi.T @ jnp.linalg.inv(t2)
    g_upd = g_pred + K @ (z - psi @ g_pred)
    H_upd = H_pred - K @ (psi @ H_pred)
    z_upd = psi @ g_upd
    return g_upd, H_upd, z_upd


if __name__ == "__main__":
    key = jax.random.PRNGKey(0)
    k1, k2, k3, k4, k5, k6 = jax.random.split(key, 6)

    # Canonical single-track shapes implied by the module's forward pass.
    z = jax.random.normal(k1, (2, 1), jnp.float32)             # measurement
    g = jax.random.normal(k2, (4, 1), jnp.float32)             # state mean
    A = jax.random.normal(k3, (4, 4), jnp.float32)
    H = A @ A.T + jnp.eye(4, dtype=jnp.float32)                # state cov (SPD)
    Bm = jax.random.normal(k4, (2, 2), jnp.float32)
    N = Bm @ Bm.T + jnp.eye(2, dtype=jnp.float32)              # meas noise (SPD)

    g_upd, H_upd, z_upd = kalman_filter(z, N, g, H)
    jax.block_until_ready((g_upd, H_upd, z_upd))

    g_ref, H_ref, z_ref = kalman_filter_ref(z, N, g, H)
    assert g_upd.shape == (4, 1) and H_upd.shape == (4, 4) and z_upd.shape == (2, 1)
    assert jnp.allclose(g_upd, g_ref, atol=1e-4, rtol=1e-4)
    assert jnp.allclose(H_upd, H_ref, atol=1e-4, rtol=1e-4)
    assert jnp.allclose(z_upd, z_ref, atol=1e-4, rtol=1e-4)

    # Lane-batched tracks (B tracks sharing H, N) — fills vreg lanes.
    B = 16
    zb = jax.random.normal(k5, (2, B), jnp.float32)
    gb = jax.random.normal(k6, (4, B), jnp.float32)
    gb_u, Hb_u, zb_u = kalman_filter(zb, N, gb, H)
    jax.block_until_ready((gb_u, Hb_u, zb_u))
    gb_r, Hb_r, zb_r = kalman_filter_ref(zb, N, gb, H)
    assert gb_u.shape == (4, B) and Hb_u.shape == (4, 4) and zb_u.shape == (2, B)
    assert jnp.allclose(gb_u, gb_r, atol=1e-4, rtol=1e-4)
    assert jnp.allclose(Hb_u, Hb_r, atol=1e-4, rtol=1e-4)
    assert jnp.allclose(zb_u, zb_r, atol=1e-4, rtol=1e-4)

    print("KERNEL_OK")
</pallas_src>

<mosaic_0001>
module attributes {stable_mosaic.version = 11 : i64} {
  func.func @_kalman_kernel(%arg0: memref<16x128xf32, #tpu.memory_space<vmem>>, %arg1: memref<16x128xf32, #tpu.memory_space<vmem>>, %arg2: memref<16x128xf32, #tpu.memory_space<vmem>>) attributes {dimension_semantics = [], scalar_prefetch = 0 : i64, scratch_operands = 0 : i64, tpu.core_type = #tpu.core_type<tc>} {
    %c0 = arith.constant 0 : index
    %c0_0 = arith.constant 0 : index
    %0 = vector.load %arg0[%c0, %c0_0] : memref<16x128xf32, #tpu.memory_space<vmem>>, vector<4x4xf32>
    %c4 = arith.constant 4 : index
    %c0_1 = arith.constant 0 : index
    %1 = vector.load %arg0[%c4, %c0_1] : memref<16x128xf32, #tpu.memory_space<vmem>>, vector<4x4xf32>
    %c8 = arith.constant 8 : index
    %c0_2 = arith.constant 0 : index
    %2 = vector.load %arg0[%c8, %c0_2] : memref<16x128xf32, #tpu.memory_space<vmem>>, vector<2x4xf32>
    %c10 = arith.constant 10 : index
    %c0_3 = arith.constant 0 : index
    %3 = vector.load %arg0[%c10, %c0_3] : memref<16x128xf32, #tpu.memory_space<vmem>>, vector<4x2xf32>
    %c0_4 = arith.constant 0 : index
    %c0_5 = arith.constant 0 : index
    %4 = vector.load %arg1[%c0_4, %c0_5] : memref<16x128xf32, #tpu.memory_space<vmem>>, vector<4x4xf32>
    %c4_6 = arith.constant 4 : index
    %c0_7 = arith.constant 0 : index
    %5 = vector.load %arg1[%c4_6, %c0_7] : memref<16x128xf32, #tpu.memory_space<vmem>>, vector<2x2xf32>
    %c6 = arith.constant 6 : index
    %c0_8 = arith.constant 0 : index
    %6 = vector.load %arg1[%c6, %c0_8] : memref<16x128xf32, #tpu.memory_space<vmem>>, vector<2x128xf32>
    %c8_9 = arith.constant 8 : index
    %c0_10 = arith.constant 0 : index
    %7 = vector.load %arg1[%c8_9, %c0_10] : memref<16x128xf32, #tpu.memory_space<vmem>>, vector<4x128xf32>
    %8 = vector.extract_strided_slice %0 {offsets = [0, 0], sizes = [4, 1], strides = [1, 1]} : vector<4x4xf32> to vector<4x1xf32>
    %9 = vector.extract_strided_slice %7 {offsets = [0, 0], sizes = [1, 128], strides = [1, 1]} : vector<4x128xf32> to vector<1x128xf32>
    %10 = vector.broadcast %8 : vector<4x1xf32> to vector<4x128xf32>
    %11 = vector.broadcast %9 : vector<1x128xf32> to vector<4x128xf32>
    %12 = arith.mulf %10, %11 : vector<4x128xf32>
    %13 = vector.extract_strided_slice %0 {offsets = [0, 1], sizes = [4, 1], strides = [1, 1]} : vector<4x4xf32> to vector<4x1xf32>
    %14 = vector.extract_strided_slice %7 {offsets = [1, 0], sizes = [1, 128], strides = [1, 1]} : vector<4x128xf32> to vector<1x128xf32>
    %15 = vector.broadcast %13 : vector<4x1xf32> to vector<4x128xf32>
    %16 = vector.broadcast %14 : vector<1x128xf32> to vector<4x128xf32>
    %17 = arith.mulf %15, %16 : vector<4x128xf32>
    %18 = arith.addf %12, %17 : vector<4x128xf32>
    %19 = vector.extract_strided_slice %0 {offsets = [0, 2], sizes = [4, 1], strides = [1, 1]} : vector<4x4xf32> to vector<4x1xf32>
    %20 = vector.extract_strided_slice %7 {offsets = [2, 0], sizes = [1, 128], strides = [1, 1]} : vector<4x128xf32> to vector<1x128xf32>
    %21 = vector.broadcast %19 : vector<4x1xf32> to vector<4x128xf32>
    %22 = vector.broadcast %20 : vector<1x128xf32> to vector<4x128xf32>
    %23 = arith.mulf %21, %22 : vector<4x128xf32>
    %24 = arith.addf %18, %23 : vector<4x128xf32>
    %25 = vector.extract_strided_slice %0 {offsets = [0, 3], sizes = [4, 1], strides = [1, 1]} : vector<4x4xf32> to vector<4x1xf32>
    %26 = vector.extract_strided_slice %7 {offsets = [3, 0], sizes = [1, 128], strides = [1, 1]} : vector<4x128xf32> to vector<1x128xf32>
    %27 = vector.broadcast %25 : vector<4x1xf32> to vector<4x128xf32>
    %28 = vector.broadcast %26 : vector<1x128xf32> to vector<4x128xf32>
    %29 = arith.mulf %27, %28 : vector<4x128xf32>
    %30 = arith.addf %24, %29 : vector<4x128xf32>
    %31 = vector.extract_strided_slice %0 {offsets = [0, 0], sizes = [4, 1], strides = [1, 1]} : vector<4x4xf32> to vector<4x1xf32>
    %32 = vector.extract_strided_slice %4 {offsets = [0, 0], sizes = [1, 4], strides = [1, 1]} : vector<4x4xf32> to vector<1x4xf32>
    %33 = vector.broadcast %31 : vector<4x1xf32> to vector<4x4xf32>
    %34 = vector.broadcast %32 : vector<1x4xf32> to vector<4x4xf32>
    %35 = arith.mulf %33, %34 : vector<4x4xf32>
    %36 = vector.extract_strided_slice %0 {offsets = [0, 1], sizes = [4, 1], strides = [1, 1]} : vector<4x4xf32> to vector<4x1xf32>
    %37 = vector.extract_strided_slice %4 {offsets = [1, 0], sizes = [1, 4], strides = [1, 1]} : vector<4x4xf32> to vector<1x4xf32>
    %38 = vector.broadcast %36 : vector<4x1xf32> to vector<4x4xf32>
    %39 = vector.broadcast %37 : vector<1x4xf32> to vector<4x4xf32>
    %40 = arith.mulf %38, %39 : vector<4x4xf32>
    %41 = arith.addf %35, %40 : vector<4x4xf32>
    %42 = vector.extract_strided_slice %0 {offsets = [0, 2], sizes = [4, 1], strides = [1, 1]} : vector<4x4xf32> to vector<4x1xf32>
    %43 = vector.extract_strided_slice %4 {offsets = [2, 0], sizes = [1, 4], strides = [1, 1]} : vector<4x4xf32> to vector<1x4xf32>
    %44 = vector.broadcast %42 : vector<4x1xf32> to vector<4x4xf32>
    %45 = vector.broadcast %43 : vector<1x4xf32> to vector<4x4xf32>
    %46 = arith.mulf %44, %45 : vector<4x4xf32>
    %47 = arith.addf %41, %46 : vector<4x4xf32>
    %48 = vector.extract_strided_slice %0 {offsets = [0, 3], sizes = [4, 1], strides = [1, 1]} : vector<4x4xf32> to vector<4x1xf32>
    %49 = vector.extract_strided_slice %4 {offsets = [3, 0], sizes = [1, 4], strides = [1, 1]} : vector<4x4xf32> to vector<1x4xf32>
    %50 = vector.broadcast %48 : vector<4x1xf32> to vector<4x4xf32>
    %51 = vector.broadcast %49 : vector<1x4xf32> to vector<4x4xf32>
    %52 = arith.mulf %50, %51 : vector<4x4xf32>
    %53 = arith.addf %47, %52 : vector<4x4xf32>
    %54 = vector.extract_strided_slice %53 {offsets = [0, 0], sizes = [4, 1], strides = [1, 1]} : vector<4x4xf32> to vector<4x1xf32>
    %55 = vector.extract_strided_slice %1 {offsets = [0, 0], sizes = [1, 4], strides = [1, 1]} : vector<4x4xf32> to vector<1x4xf32>
    %56 = vector.broadcast %54 : vector<4x1xf32> to vector<4x4xf32>
    %57 = vector.broadcast %55 : vector<1x4xf32> to vector<4x4xf32>
    %58 = arith.mulf %56, %57 : vector<4x4xf32>
    %59 = vector.extract_strided_slice %53 {offsets = [0, 1], sizes = [4, 1], strides = [1, 1]} : vector<4x4xf32> to vector<4x1xf32>
    %60 = vector.extract_strided_slice %1 {offsets = [1, 0], sizes = [1, 4], strides = [1, 1]} : vector<4x4xf32> to vector<1x4xf32>
    %61 = vector.broadcast %59 : vector<4x1xf32> to vector<4x4xf32>
    %62 = vector.broadcast %60 : vector<1x4xf32> to vector<4x4xf32>
    %63 = arith.mulf %61, %62 : vector<4x4xf32>
    %64 = arith.addf %58, %63 : vector<4x4xf32>
    %65 = vector.extract_strided_slice %53 {offsets = [0, 2], sizes = [4, 1], strides = [1, 1]} : vector<4x4xf32> to vector<4x1xf32>
    %66 = vector.extract_strided_slice %1 {offsets = [2, 0], sizes = [1, 4], strides = [1, 1]} : vector<4x4xf32> to vector<1x4xf32>
    %67 = vector.broadcast %65 : vector<4x1xf32> to vector<4x4xf32>
    %68 = vector.broadcast %66 : vector<1x4xf32> to vector<4x4xf32>
    %69 = arith.mulf %67, %68 : vector<4x4xf32>
    %70 = arith.addf %64, %69 : vector<4x4xf32>
    %71 = vector.extract_strided_slice %53 {offsets = [0, 3], sizes = [4, 1], strides = [1, 1]} : vector<4x4xf32> to vector<4x1xf32>
    %72 = vector.extract_strided_slice %1 {offsets = [3, 0], sizes = [1, 4], strides = [1, 1]} : vector<4x4xf32> to vector<1x4xf32>
    %73 = vector.broadcast %71 : vector<4x1xf32> to vector<4x4xf32>
    %74 = vector.broadcast %72 : vector<1x4xf32> to vector<4x4xf32>
    %75 = arith.mulf %73, %74 : vector<4x4xf32>
    %76 = arith.addf %70, %75 : vector<4x4xf32>
    %77 = vector.extract_strided_slice %2 {offsets = [0, 0], sizes = [2, 1], strides = [1, 1]} : vector<2x4xf32> to vector<2x1xf32>
    %78 = vector.extract_strided_slice %76 {offsets = [0, 0], sizes = [1, 4], strides = [1, 1]} : vector<4x4xf32> to vector<1x4xf32>
    %79 = vector.broadcast %77 : vector<2x1xf32> to vector<2x4xf32>
    %80 = vector.broadcast %78 : vector<1x4xf32> to vector<2x4xf32>
    %81 = arith.mulf %79, %80 : vector<2x4xf32>
    %82 = vector.extract_strided_slice %2 {offsets = [0, 1], sizes = [2, 1], strides = [1, 1]} : vector<2x4xf32> to vector<2x1xf32>
    %83 = vector.extract_strided_slice %76 {offsets = [1, 0], sizes = [1, 4], strides = [1, 1]} : vector<4x4xf32> to vector<1x4xf32>
    %84 = vector.broadcast %82 : vector<2x1xf32> to vector<2x4xf32>
    %85 = vector.broadcast %83 : vector<1x4xf32> to vector<2x4xf32>
    %86 = arith.mulf %84, %85 : vector<2x4xf32>
    %87 = arith.addf %81, %86 : vector<2x4xf32>
    %88 = vector.extract_strided_slice %2 {offsets = [0, 2], sizes = [2, 1], strides = [1, 1]} : vector<2x4xf32> to vector<2x1xf32>
    %89 = vector.extract_strided_slice %76 {offsets = [2, 0], sizes = [1, 4], strides = [1, 1]} : vector<4x4xf32> to vector<1x4xf32>
    %90 = vector.broadcast %88 : vector<2x1xf32> to vector<2x4xf32>
    %91 = vector.broadcast %89 : vector<1x4xf32> to vector<2x4xf32>
    %92 = arith.mulf %90, %91 : vector<2x4xf32>
    %93 = arith.addf %87, %92 : vector<2x4xf32>
    %94 = vector.extract_strided_slice %2 {offsets = [0, 3], sizes = [2, 1], strides = [1, 1]} : vector<2x4xf32> to vector<2x1xf32>
    %95 = vector.extract_strided_slice %76 {offsets = [3, 0], sizes = [1, 4], strides = [1, 1]} : vector<4x4xf32> to vector<1x4xf32>
    %96 = vector.broadcast %94 : vector<2x1xf32> to vector<2x4xf32>
    %97 = vector.broadcast %95 : vector<1x4xf32> to vector<2x4xf32>
    %98 = arith.mulf %96, %97 : vector<2x4xf32>
    %99 = arith.addf %93, %98 : vector<2x4xf32>
    %100 = vector.extract_strided_slice %99 {offsets = [0, 0], sizes = [2, 1], strides = [1, 1]} : vector<2x4xf32> to vector<2x1xf32>
    %101 = vector.extract_strided_slice %3 {offsets = [0, 0], sizes = [1, 2], strides = [1, 1]} : vector<4x2xf32> to vector<1x2xf32>
    %102 = vector.broadcast %100 : vector<2x1xf32> to vector<2x2xf32>
    %103 = vector.broadcast %101 : vector<1x2xf32> to vector<2x2xf32>
    %104 = arith.mulf %102, %103 : vector<2x2xf32>
    %105 = vector.extract_strided_slice %99 {offsets = [0, 1], sizes = [2, 1], strides = [1, 1]} : vector<2x4xf32> to vector<2x1xf32>
    %106 = vector.extract_strided_slice %3 {offsets = [1, 0], sizes = [1, 2], strides = [1, 1]} : vector<4x2xf32> to vector<1x2xf32>
    %107 = vector.broadcast %105 : vector<2x1xf32> to vector<2x2xf32>
    %108 = vector.broadcast %106 : vector<1x2xf32> to vector<2x2xf32>
    %109 = arith.mulf %107, %108 : vector<2x2xf32>
    %110 = arith.addf %104, %109 : vector<2x2xf32>
    %111 = vector.extract_strided_slice %99 {offsets = [0, 2], sizes = [2, 1], strides = [1, 1]} : vector<2x4xf32> to vector<2x1xf32>
    %112 = vector.extract_strided_slice %3 {offsets = [2, 0], sizes = [1, 2], strides = [1, 1]} : vector<4x2xf32> to vector<1x2xf32>
    %113 = vector.broadcast %111 : vector<2x1xf32> to vector<2x2xf32>
    %114 = vector.broadcast %112 : vector<1x2xf32> to vector<2x2xf32>
    %115 = arith.mulf %113, %114 : vector<2x2xf32>
    %116 = arith.addf %110, %115 : vector<2x2xf32>
    %117 = vector.extract_strided_slice %99 {offsets = [0, 3], sizes = [2, 1], strides = [1, 1]} : vector<2x4xf32> to vector<2x1xf32>
    %118 = vector.extract_strided_slice %3 {offsets = [3, 0], sizes = [1, 2], strides = [1, 1]} : vector<4x2xf32> to vector<1x2xf32>
    %119 = vector.broadcast %117 : vector<2x1xf32> to vector<2x2xf32>
    %120 = vector.broadcast %118 : vector<1x2xf32> to vector<2x2xf32>
    %121 = arith.mulf %119, %120 : vector<2x2xf32>
    %122 = arith.addf %116, %121 : vector<2x2xf32>
    %123 = arith.addf %122, %5 : vector<2x2xf32>
    %124 = vector.extract_strided_slice %123 {offsets = [0, 0], sizes = [1, 1], strides = [1, 1]} : vector<2x2xf32> to vector<1x1xf32>
    %125 = vector.extract_strided_slice %123 {offsets = [0, 1], sizes = [1, 1], strides = [1, 1]} : vector<2x2xf32> to vector<1x1xf32>
    %126 = vector.extract_strided_slice %123 {offsets = [1, 0], sizes = [1, 1], strides = [1, 1]} : vector<2x2xf32> to vector<1x1xf32>
    %127 = vector.extract_strided_slice %123 {offsets = [1, 1], sizes = [1, 1], strides = [1, 1]} : vector<2x2xf32> to vector<1x1xf32>
    %128 = arith.mulf %124, %127 : vector<1x1xf32>
    %129 = arith.mulf %125, %126 : vector<1x1xf32>
    %130 = arith.subf %128, %129 : vector<1x1xf32>
    %131 = tpu.reciprocal %130 : vector<1x1xf32> -> vector<1x1xf32>
    %132 = vector.extract_strided_slice %76 {offsets = [0, 0], sizes = [4, 1], strides = [1, 1]} : vector<4x4xf32> to vector<4x1xf32>
    %133 = vector.extract_strided_slice %3 {offsets = [0, 0], sizes = [1, 2], strides = [1, 1]} : vector<4x2xf32> to vector<1x2xf32>
    %134 = vector.broadcast %132 : vector<4x1xf32> to vector<4x2xf32>
    %135 = vector.broadcast %133 : vector<1x2xf32> to vector<4x2xf32>
    %136 = arith.mulf %134, %135 : vector<4x2xf32>
    %137 = vector.extract_strided_slice %76 {offsets = [0, 1], sizes = [4, 1], strides = [1, 1]} : vector<4x4xf32> to vector<4x1xf32>
    %138 = vector.extract_strided_slice %3 {offsets = [1, 0], sizes = [1, 2], strides = [1, 1]} : vector<4x2xf32> to vector<1x2xf32>
    %139 = vector.broadcast %137 : vector<4x1xf32> to vector<4x2xf32>
    %140 = vector.broadcast %138 : vector<1x2xf32> to vector<4x2xf32>
    %141 = arith.mulf %139, %140 : vector<4x2xf32>
    %142 = arith.addf %136, %141 : vector<4x2xf32>
    %143 = vector.extract_strided_slice %76 {offsets = [0, 2], sizes = [4, 1], strides = [1, 1]} : vector<4x4xf32> to vector<4x1xf32>
    %144 = vector.extract_strided_slice %3 {offsets = [2, 0], sizes = [1, 2], strides = [1, 1]} : vector<4x2xf32> to vector<1x2xf32>
    %145 = vector.broadcast %143 : vector<4x1xf32> to vector<4x2xf32>
    %146 = vector.broadcast %144 : vector<1x2xf32> to vector<4x2xf32>
    %147 = arith.mulf %145, %146 : vector<4x2xf32>
    %148 = arith.addf %142, %147 : vector<4x2xf32>
    %149 = vector.extract_strided_slice %76 {offsets = [0, 3], sizes = [4, 1], strides = [1, 1]} : vector<4x4xf32> to vector<4x1xf32>
    %150 = vector.extract_strided_slice %3 {offsets = [3, 0], sizes = [1, 2], strides = [1, 1]} : vector<4x2xf32> to vector<1x2xf32>
    %151 = vector.broadcast %149 : vector<4x1xf32> to vector<4x2xf32>
    %152 = vector.broadcast %150 : vector<1x2xf32> to vector<4x2xf32>
    %153 = arith.mulf %151, %152 : vector<4x2xf32>
    %154 = arith.addf %148, %153 : vector<4x2xf32>
    %155 = vector.extract_strided_slice %154 {offsets = [0, 0], sizes = [4, 1], strides = [1, 1]} : vector<4x2xf32> to vector<4x1xf32>
    %156 = vector.broadcast %127 : vector<1x1xf32> to vector<4x1xf32>
    %157 = arith.mulf %155, %156 : vector<4x1xf32>
    %158 = vector.extract_strided_slice %154 {offsets = [0, 1], sizes = [4, 1], strides = [1, 1]} : vector<4x2xf32> to vector<4x1xf32>
    %159 = vector.broadcast %126 : vector<1x1xf32> to vector<4x1xf32>
    %160 = arith.mulf %158, %159 : vector<4x1xf32>
    %161 = arith.subf %157, %160 : vector<4x1xf32>
    %162 = vector.broadcast %131 : vector<1x1xf32> to vector<4x1xf32>
    %163 = arith.mulf %161, %162 : vector<4x1xf32>
    %164 = vector.extract_strided_slice %154 {offsets = [0, 1], sizes = [4, 1], strides = [1, 1]} : vector<4x2xf32> to vector<4x1xf32>
    %165 = vector.broadcast %124 : vector<1x1xf32> to vector<4x1xf32>
    %166 = arith.mulf %164, %165 : vector<4x1xf32>
    %167 = vector.extract_strided_slice %154 {offsets = [0, 0], sizes = [4, 1], strides = [1, 1]} : vector<4x2xf32> to vector<4x1xf32>
    %168 = vector.broadcast %125 : vector<1x1xf32> to vector<4x1xf32>
    %169 = arith.mulf %167, %168 : vector<4x1xf32>
    %170 = arith.subf %166, %169 : vector<4x1xf32>
    %171 = vector.broadcast %131 : vector<1x1xf32> to vector<4x1xf32>
    %172 = arith.mulf %170, %171 : vector<4x1xf32>
    %173 = vector.extract_strided_slice %2 {offsets = [0, 0], sizes = [2, 1], strides = [1, 1]} : vector<2x4xf32> to vector<2x1xf32>
    %174 = vector.extract_strided_slice %30 {offsets = [0, 0], sizes = [1, 128], strides = [1, 1]} : vector<4x128xf32> to vector<1x128xf32>
    %175 = vector.broadcast %173 : vector<2x1xf32> to vector<2x128xf32>
    %176 = vector.broadcast %174 : vector<1x128xf32> to vector<2x128xf32>
    %177 = arith.mulf %175, %176 : vector<2x128xf32>
    %178 = vector.extract_strided_slice %2 {offsets = [0, 1], sizes = [2, 1], strides = [1, 1]} : vector<2x4xf32> to vector<2x1xf32>
    %179 = vector.extract_strided_slice %30 {offsets = [1, 0], sizes = [1, 128], strides = [1, 1]} : vector<4x128xf32> to vector<1x128xf32>
    %180 = vector.broadcast %178 : vector<2x1xf32> to vector<2x128xf32>
    %181 = vector.broadcast %179 : vector<1x128xf32> to vector<2x128xf32>
    %182 = arith.mulf %180, %181 : vector<2x128xf32>
    %183 = arith.addf %177, %182 : vector<2x128xf32>
    %184 = vector.extract_strided_slice %2 {offsets = [0, 2], sizes = [2, 1], strides = [1, 1]} : vector<2x4xf32> to vector<2x1xf32>
    %185 = vector.extract_strided_slice %30 {offsets = [2, 0], sizes = [1, 128], strides = [1, 1]} : vector<4x128xf32> to vector<1x128xf32>
    %186 = vector.broadcast %184 : vector<2x1xf32> to vector<2x128xf32>
    %187 = vector.broadcast %185 : vector<1x128xf32> to vector<2x128xf32>
    %188 = arith.mulf %186, %187 : vector<2x128xf32>
    %189 = arith.addf %183, %188 : vector<2x128xf32>
    %190 = vector.extract_strided_slice %2 {offsets = [0, 3], sizes = [2, 1], strides = [1, 1]} : vector<2x4xf32> to vector<2x1xf32>
    %191 = vector.extract_strided_slice %30 {offsets = [3, 0], sizes = [1, 128], strides = [1, 1]} : vector<4x128xf32> to vector<1x128xf32>
    %192 = vector.broadcast %190 : vector<2x1xf32> to vector<2x128xf32>
    %193 = vector.broadcast %191 : vector<1x128xf32> to vector<2x128xf32>
    %194 = arith.mulf %192, %193 : vector<2x128xf32>
    %195 = arith.addf %189, %194 : vector<2x128xf32>
    %196 = arith.subf %6, %195 : vector<2x128xf32>
    %197 = vector.extract_strided_slice %196 {offsets = [0, 0], sizes = [1, 128], strides = [1, 1]} : vector<2x128xf32> to vector<1x128xf32>
    %198 = vector.broadcast %163 : vector<4x1xf32> to vector<4x128xf32>
    %199 = vector.broadcast %197 : vector<1x128xf32> to vector<4x128xf32>
    %200 = arith.mulf %198, %199 : vector<4x128xf32>
    %201 = arith.addf %30, %200 : vector<4x128xf32>
    %202 = vector.extract_strided_slice %196 {offsets = [1, 0], sizes = [1, 128], strides = [1, 1]} : vector<2x128xf32> to vector<1x128xf32>
    %203 = vector.broadcast %172 : vector<4x1xf32> to vector<4x128xf32>
    %204 = vector.broadcast %202 : vector<1x128xf32> to vector<4x128xf32>
    %205 = arith.mulf %203, %204 : vector<4x128xf32>
    %206 = arith.addf %201, %205 : vector<4x128xf32>
    %207 = vector.extract_strided_slice %99 {offsets = [0, 0], sizes = [1, 4], strides = [1, 1]} : vector<2x4xf32> to vector<1x4xf32>
    %208 = vector.broadcast %163 : vector<4x1xf32> to vector<4x4xf32>
    %209 = vector.broadcast %207 : vector<1x4xf32> to vector<4x4xf32>
    %210 = arith.mulf %208, %209 : vector<4x4xf32>
    %211 = vector.extract_strided_slice %99 {offsets = [1, 0], sizes = [1, 4], strides = [1, 1]} : vector<2x4xf32> to vector<1x4xf32>
    %212 = vector.broadcast %172 : vector<4x1xf32> to vector<4x4xf32>
    %213 = vector.broadcast %211 : vector<1x4xf32> to vector<4x4xf32>
    %214 = arith.mulf %212, %213 : vector<4x4xf32>
    %215 = arith.addf %210, %214 : vector<4x4xf32>
    %216 = arith.subf %76, %215 : vector<4x4xf32>
    %217 = vector.extract_strided_slice %2 {offsets = [0, 0], sizes = [2, 1], strides = [1, 1]} : vector<2x4xf32> to vector<2x1xf32>
    %218 = vector.extract_strided_slice %206 {offsets = [0, 0], sizes = [1, 128], strides = [1, 1]} : vector<4x128xf32> to vector<1x128xf32>
    %219 = vector.broadcast %217 : vector<2x1xf32> to vector<2x128xf32>
    %220 = vector.broadcast %218 : vector<1x128xf32> to vector<2x128xf32>
    %221 = arith.mulf %219, %220 : vector<2x128xf32>
    %222 = vector.extract_strided_slice %2 {offsets = [0, 1], sizes = [2, 1], strides = [1, 1]} : vector<2x4xf32> to vector<2x1xf32>
    %223 = vector.extract_strided_slice %206 {offsets = [1, 0], sizes = [1, 128], strides = [1, 1]} : vector<4x128xf32> to vector<1x128xf32>
    %224 = vector.broadcast %222 : vector<2x1xf32> to vector<2x128xf32>
    %225 = vector.broadcast %223 : vector<1x128xf32> to vector<2x128xf32>
    %226 = arith.mulf %224, %225 : vector<2x128xf32>
    %227 = arith.addf %221, %226 : vector<2x128xf32>
    %228 = vector.extract_strided_slice %2 {offsets = [0, 2], sizes = [2, 1], strides = [1, 1]} : vector<2x4xf32> to vector<2x1xf32>
    %229 = vector.extract_strided_slice %206 {offsets = [2, 0], sizes = [1, 128], strides = [1, 1]} : vector<4x128xf32> to vector<1x128xf32>
    %230 = vector.broadcast %228 : vector<2x1xf32> to vector<2x128xf32>
    %231 = vector.broadcast %229 : vector<1x128xf32> to vector<2x128xf32>
    %232 = arith.mulf %230, %231 : vector<2x128xf32>
    %233 = arith.addf %227, %232 : vector<2x128xf32>
    %234 = vector.extract_strided_slice %2 {offsets = [0, 3], sizes = [2, 1], strides = [1, 1]} : vector<2x4xf32> to vector<2x1xf32>
    %235 = vector.extract_strided_slice %206 {offsets = [3, 0], sizes = [1, 128], strides = [1, 1]} : vector<4x128xf32> to vector<1x128xf32>
    %236 = vector.broadcast %234 : vector<2x1xf32> to vector<2x128xf32>
    %237 = vector.broadcast %235 : vector<1x128xf32> to vector<2x128xf32>
    %238 = arith.mulf %236, %237 : vector<2x128xf32>
    %239 = arith.addf %233, %238 : vector<2x128xf32>
    %cst = arith.constant 0.000000e+00 : f32
    %240 = vector.broadcast %cst : f32 to vector<16x128xf32>
    %c0_11 = arith.constant 0 : index
    %c0_12 = arith.constant 0 : index
    %241 = vector.load %arg2[%c0_11, %c0_12] : memref<16x128xf32, #tpu.memory_space<vmem>>, vector<16x128xf32>
    tpu.vector_store %arg2[%c0_11, %c0_12], %240 {strides = array<i32>} : memref<16x128xf32, #tpu.memory_space<vmem>>, vector<16x128xf32>,
    %c0_13 = arith.constant 0 : index
    %c0_14 = arith.constant 0 : index
    %242 = vector.load %arg2[%c0_13, %c0_14] : memref<16x128xf32, #tpu.memory_space<vmem>>, vector<4x128xf32>
    tpu.vector_store %arg2[%c0_13, %c0_14], %206 {strides = array<i32>} : memref<16x128xf32, #tpu.memory_space<vmem>>, vector<4x128xf32>,
    %c4_15 = arith.constant 4 : index
    %c0_16 = arith.constant 0 : index
    %243 = vector.load %arg2[%c4_15, %c0_16] : memref<16x128xf32, #tpu.memory_space<vmem>>, vector<2x128xf32>
    tpu.vector_store %arg2[%c4_15, %c0_16], %239 {strides = array<i32>} : memref<16x128xf32, #tpu.memory_space<vmem>>, vector<2x128xf32>,
    %c8_17 = arith.constant 8 : index
    %c0_18 = arith.constant 0 : index
    %244 = vector.load %arg2[%c8_17, %c0_18] : memref<16x128xf32, #tpu.memory_space<vmem>>, vector<4x4xf32>
    tpu.vector_store %arg2[%c8_17, %c0_18], %216 {strides = array<i32>} : memref<16x128xf32, #tpu.memory_space<vmem>>, vector<4x4xf32>,
    return
  }
}

</mosaic_0001>

<llo_original>
// kernel: kalman_filter.1
$region0: #{kalman_filter.1}
  #allocation0 [shape = 'u32[]', space=smem, size = 0x4, offset = 0x4, fixed_abs, tag = 'smem constant byte address 0x4 - core index']
  #allocation1 [shape = 'u32[144,128]{1,0:T(1,128)}', space=vmem, size = 0x12000, scoped, tag = 'internal scratch']
  %s0 = inlined_call_operand.vmem [shape: f32[16,128], index: 0, kind: input, shape index: {}]
  %s1 = inlined_call_operand.vmem [shape: f32[16,128], index: 1, kind: input, shape index: {}]
  %s2 = inlined_call_operand.vmem [shape: f32[16,128], index: 2, kind: output, shape index: {}]
  %s3 = sld [smem:[#allocation0]]
  $region18: #{kalman_filter.1} parent=0
    _
  %s5 = ssub.s32 1, %s3
  %s6 = scalar_select 0, %s5, %s3
  // Predicated region
  $region2: #{kalman_filter.1} parent=0 // pred_check
    _
  $region3: #{kalman_filter.1} parent=0 // pred_check_branch
    %8 = sbr.rel (0) target = $region5
  $region4: #{kalman_filter.1} parent=0 // pred_region
    _
  $region5: #{kalman_filter.1} parent=0 // pred_fallthru
    _
  // Predicated region
  $region6: #{kalman_filter.1} parent=0 // pred_check
    _
  $region7: #{kalman_filter.1} parent=0 // pred_check_branch
    %10 = sbr.rel (0) target = $region9
  $region8: #{kalman_filter.1} parent=0 // pred_region
    _
  $region9: #{kalman_filter.1} parent=0 // pred_fallthru
    _
  %v11 = vld [vmem:[%s0] sm:$0xf]
  %v12 = vld [vmem:[%s0 + $0x4] sm:$0xf]
  %v13 = vld [vmem:[%s0 + $0x8] sm:$0x3]
  %v14 = vld [vmem:[%s0 + $0xa] sm:$0xf]
  %v15 = vld [vmem:[%s1] sm:$0xf]
  %v16 = vld [vmem:[%s1 + $0x4] sm:$0x3]
  %v17 = vld [vmem:[%s1 + $0x6] sm:$0x3]
  %v18 = vld [vmem:[%s1 + $0x8] sm:$0xf]
  %20 = vset.pattern.permute.xlu0 0
  %21 = vperm.xlu0 %20, %v11
  %v22 = vpop.permute.xlu0 %21
  %v24 = vlaneseq
  %v25 = vshrl.u32 %v24, 7
  %v26 = vsub.s32 0, %v25
  %v27 = vrot.slane %v18, %v26
  %v28 = vmul.f32 %v22, %v27
  %29 = vset.pattern.permute.xlu0 1
  %30 = vperm.xlu0 %29, %v11
  %v31 = vpop.permute.xlu0 %30
  %v33 = vlaneseq
  %v34 = vshrl.u32 %v33, 7
  %v35 = vsub.s32 1, %v34
  %v36 = vrot.slane %v18, %v35
  %v37 = vmul.f32 %v31, %v36
  %v38 = vadd.f32 %v28, %v37
  %39 = vset.pattern.permute.xlu0 2
  %40 = vperm.xlu0 %39, %v11
  %v41 = vpop.permute.xlu0 %40
  %v43 = vlaneseq
  %v44 = vshrl.u32 %v43, 7
  %v45 = vsub.s32 2, %v44
  %v46 = vrot.slane %v18, %v45
  %v47 = vmul.f32 %v41, %v46
  %v48 = vadd.f32 %v38, %v47
  %49 = vset.pattern.permute.xlu0 3
  %50 = vperm.xlu0 %49, %v11
  %v51 = vpop.permute.xlu0 %50
  %v53 = vlaneseq
  %v54 = vshrl.u32 %v53, 7
  %v55 = vsub.s32 3, %v54
  %v56 = vrot.slane %v18, %v55
  %v57 = vmul.f32 %v51, %v56
  %v58 = vadd.f32 %v48, %v57
  %v59 = vlaneseq
  %v60 = vshrl.u32 %v59, 7
  %v61 = vsub.s32 0, %v60
  %v62 = vrot.slane %v15, %v61
  %v63 = vmul.f32 %v22, %v62
  %v64 = vlaneseq
  %v65 = vshrl.u32 %v64, 7
  %v66 = vsub.s32 1, %v65
  %v67 = vrot.slane %v15, %v66
  %v68 = vmul.f32 %v31, %v67
  %v69 = vadd.f32 %v63, %v68
  %v70 = vlaneseq
  %v71 = vshrl.u32 %v70, 7
  %v72 = vsub.s32 2, %v71
  %v73 = vrot.slane %v15, %v72
  %v74 = vmul.f32 %v41, %v73
  %v75 = vadd.f32 %v69, %v74
  %v76 = vlaneseq
  %v77 = vshrl.u32 %v76, 7
  %v78 = vsub.s32 3, %v77
  %v79 = vrot.slane %v15, %v78
  %v80 = vmul.f32 %v51, %v79
  %v81 = vadd.f32 %v75, %v80
  %83 = vset.pattern.permute.xlu0 0
  %84 = vperm.xlu0 %83, %v81
  %v85 = vpop.permute.xlu0 %84
  %v87 = vlaneseq
  %v88 = vshrl.u32 %v87, 7
  %v89 = vsub.s32 0, %v88
  %v90 = vrot.slane %v12, %v89
  %v91 = vmul.f32 %v85, %v90
  %92 = vset.pattern.permute.xlu0 1
  %93 = vperm.xlu0 %92, %v81
  %v94 = vpop.permute.xlu0 %93
  %v96 = vlaneseq
  %v97 = vshrl.u32 %v96, 7
  %v98 = vsub.s32 1, %v97
  %v99 = vrot.slane %v12, %v98
  %v100 = vmul.f32 %v94, %v99
  %v101 = vadd.f32 %v91, %v100
  %102 = vset.pattern.permute.xlu0 2
  %103 = vperm.xlu0 %102, %v81
  %v104 = vpop.permute.xlu0 %103
  %v106 = vlaneseq
  %v107 = vshrl.u32 %v106, 7
  %v108 = vsub.s32 2, %v107
  %v109 = vrot.slane %v12, %v108
  %v110 = vmul.f32 %v104, %v109
  %v111 = vadd.f32 %v101, %v110
  %112 = vset.pattern.permute.xlu0 3
  %113 = vperm.xlu0 %112, %v81
  %v114 = vpop.permute.xlu0 %113
  %v116 = vlaneseq
  %v117 = vshrl.u32 %v116, 7
  %v118 = vsub.s32 3, %v117
  %v119 = vrot.slane %v12, %v118
  %v120 = vmul.f32 %v114, %v119
  %v121 = vadd.f32 %v111, %v120
  %123 = vset.pattern.permute.xlu0 0
  %124 = vperm.xlu0 %123, %v13
  %v125 = vpop.permute.xlu0 %124
  %v127 = vlaneseq
  %v128 = vshrl.u32 %v127, 7
  %v129 = vsub.s32 0, %v128
  %v130 = vrot.slane %v121, %v129
  %v131 = vmul.f32 %v125, %v130
  %132 = vset.pattern.permute.xlu0 1
  %133 = vperm.xlu0 %132, %v13
  %v134 = vpop.permute.xlu0 %133
  %v136 = vlaneseq
  %v137 = vshrl.u32 %v136, 7
  %v138 = vsub.s32 1, %v137
  %v139 = vrot.slane %v121, %v138
  %v140 = vmul.f32 %v134, %v139
  %v141 = vadd.f32 %v131, %v140
  %142 = vset.pattern.permute.xlu0 2
  %143 = vperm.xlu0 %142, %v13
  %v144 = vpop.permute.xlu0 %143
  %v146 = vlaneseq
  %v147 = vshrl.u32 %v146, 7
  %v148 = vsub.s32 2, %v147
  %v149 = vrot.slane %v121, %v148
  %v150 = vmul.f32 %v144, %v149
  %v151 = vadd.f32 %v141, %v150
  %152 = vset.pattern.permute.xlu0 3
  %153 = vperm.xlu0 %152, %v13
  %v154 = vpop.permute.xlu0 %153
  %v156 = vlaneseq
  %v157 = vshrl.u32 %v156, 7
  %v158 = vsub.s32 3, %v157
  %v159 = vrot.slane %v121, %v158
  %v160 = vmul.f32 %v154, %v159
  %v161 = vadd.f32 %v151, %v160
  %163 = vset.pattern.permute.xlu0 0
  %164 = vperm.xlu0 %163, %v161
  %v165 = vpop.permute.xlu0 %164
  %v167 = vlaneseq
  %v168 = vshrl.u32 %v167, 7
  %v169 = vsub.s32 0, %v168
  %v170 = vrot.slane %v14, %v169
  %v171 = vmul.f32 %v165, %v170
  %172 = vset.pattern.permute.xlu0 1
  %173 = vperm.xlu0 %172, %v161
  %v174 = vpop.permute.xlu0 %173
  %v176 = vlaneseq
  %v177 = vshrl.u32 %v176, 7
  %v178 = vsub.s32 1, %v177
  %v179 = vrot.slane %v14, %v178
  %v180 = vmul.f32 %v174, %v179
  %v181 = vadd.f32 %v171, %v180
  %182 = vset.pattern.permute.xlu0 2
  %183 = vperm.xlu0 %182, %v161
  %v184 = vpop.permute.xlu0 %183
  %v186 = vlaneseq
  %v187 = vshrl.u32 %v186, 7
  %v188 = vsub.s32 2, %v187
  %v189 = vrot.slane %v14, %v188
  %v190 = vmul.f32 %v184, %v189
  %v191 = vadd.f32 %v181, %v190
  %192 = vset.pattern.permute.xlu0 3
  %193 = vperm.xlu0 %192, %v161
  %v194 = vpop.permute.xlu0 %193
  %v196 = vlaneseq
  %v197 = vshrl.u32 %v196, 7
  %v198 = vsub.s32 3, %v197
  %v199 = vrot.slane %v14, %v198
  %v200 = vmul.f32 %v194, %v199
  %v201 = vadd.f32 %v191, %v200
  %v202 = vadd.f32 %v201, %v16
  %v204 = vrot.slane %v202, 1
  %205 = vrot.lane.b32.xlu0 %v204, 127
  %v206 = vpop.permute.xlu0 %205
  %v208 = vmul.f32 %v202, %v206
  %209 = vrot.lane.b32.xlu0 %v204, 1
  %v210 = vpop.permute.xlu0 %209
  %v212 = vmul.f32 %v202, %v210
  %214 = vrot.lane.b32.xlu0 %v212, 127
  %v215 = vpop.permute.xlu0 %214
  %v217 = vsub.f32 %v208, %v215
  %v218 = vrcp.pop %v217
  %220 = vset.pattern.permute.xlu0 0
  %221 = vperm.xlu0 %220, %v121
  %v222 = vpop.permute.xlu0 %221
  %v224 = vmul.f32 %v222, %v170
  %225 = vset.pattern.permute.xlu0 1
  %226 = vperm.xlu0 %225, %v121
  %v227 = vpop.permute.xlu0 %226
  %v229 = vmul.f32 %v227, %v179
  %v230 = vadd.f32 %v224, %v229
  %231 = vset.pattern.permute.xlu0 2
  %232 = vperm.xlu0 %231, %v121
  %v233 = vpop.permute.xlu0 %232
  %v235 = vmul.f32 %v233, %v189
  %v236 = vadd.f32 %v230, %v235
  %237 = vset.pattern.permute.xlu0 3
  %238 = vperm.xlu0 %237, %v121
  %v239 = vpop.permute.xlu0 %238
  %v241 = vmul.f32 %v239, %v199
  %v242 = vadd.f32 %v236, %v241
  %v243 = vlaneseq
  %v244 = vshrl.u32 %v243, 7
  %v245 = vsub.s32 1, %v244
  %v246 = vrot.slane %v202, %v245
  %248 = vrot.lane.b32.xlu0 %v246, 127
  %v249 = vpop.permute.xlu0 %248
  %v251 = vmul.f32 %v242, %v249
  %252 = vrot.lane.b32.xlu0 %v246, 1
  %v253 = vpop.permute.xlu0 %252
  %v255 = vmul.f32 %v242, %v253
  %257 = vrot.lane.b32.xlu0 %v255, 127
  %v258 = vpop.permute.xlu0 %257
  %v260 = vsub.f32 %v251, %v258
  %v261 = vlaneseq
  %v262 = vshrl.u32 %v261, 7
  %v263 = vsub.s32 0, %v262
  %v264 = vrot.slane %v218, %v263
  %v265 = vmul.f32 %v260, %v264
  %v266 = vlaneseq
  %v267 = vshrl.u32 %v266, 7
  %v268 = vsub.s32 0, %v267
  %v269 = vrot.slane %v202, %v268
  %271 = vrot.lane.b32.xlu0 %v269, 1
  %v272 = vpop.permute.xlu0 %271
  %v274 = vmul.f32 %v242, %v272
  %275 = vrot.lane.b32.xlu0 %v269, 127
  %v276 = vpop.permute.xlu0 %275
  %v278 = vmul.f32 %v242, %v276
  %280 = vrot.lane.b32.xlu0 %v278, 1
  %v281 = vpop.permute.xlu0 %280
  %v283 = vsub.f32 %v274, %v281
  %285 = vrot.lane.b32.xlu0 %v264, 1
  %v286 = vpop.permute.xlu0 %285
  %v288 = vmul.f32 %v283, %v286
  %v289 = vlaneseq
  %v290 = vshrl.u32 %v289, 7
  %v291 = vsub.s32 0, %v290
  %v292 = vrot.slane %v58, %v291
  %v293 = vmul.f32 %v125, %v292
  %v294 = vlaneseq
  %v295 = vshrl.u32 %v294, 7
  %v296 = vsub.s32 1, %v295
  %v297 = vrot.slane %v58, %v296
  %v298 = vmul.f32 %v134, %v297
  %v299 = vadd.f32 %v293, %v298
  %v300 = vlaneseq
  %v301 = vshrl.u32 %v300, 7
  %v302 = vsub.s32 2, %v301
  %v303 = vrot.slane %v58, %v302
  %v304 = vmul.f32 %v144, %v303
  %v305 = vadd.f32 %v299, %v304
  %v306 = vlaneseq
  %v307 = vshrl.u32 %v306, 7
  %v308 = vsub.s32 3, %v307
  %v309 = vrot.slane %v58, %v308
  %v310 = vmul.f32 %v154, %v309
  %v311 = vadd.f32 %v305, %v310
  %v312 = vsub.f32 %v17, %v311
  %314 = vset.pattern.permute.xlu0 0
  %315 = vperm.xlu0 %314, %v265
  %v316 = vpop.permute.xlu0 %315
  %v318 = vlaneseq
  %v319 = vshrl.u32 %v318, 7
  %v320 = vsub.s32 0, %v319
  %v321 = vrot.slane %v312, %v320
  %v322 = vmul.f32 %v316, %v321
  %v323 = vadd.f32 %v58, %v322
  %325 = vset.pattern.permute.xlu0 1
  %326 = vperm.xlu0 %325, %v288
  %v327 = vpop.permute.xlu0 %326
  %v329 = vlaneseq
  %v330 = vshrl.u32 %v329, 7
  %v331 = vsub.s32 1, %v330
  %v332 = vrot.slane %v312, %v331
  %v333 = vmul.f32 %v327, %v332
  %v334 = vadd.f32 %v323, %v333
  %v335 = vlaneseq
  %v336 = vshrl.u32 %v335, 7
  %v337 = vsub.s32 0, %v336
  %v338 = vrot.slane %v161, %v337
  %v339 = vmul.f32 %v316, %v338
  %v340 = vlaneseq
  %v341 = vshrl.u32 %v340, 7
  %v342 = vsub.s32 1, %v341
  %v343 = vrot.slane %v161, %v342
  %v344 = vmul.f32 %v327, %v343
  %v345 = vadd.f32 %v339, %v344
  %v346 = vsub.f32 %v121, %v345
  %v347 = vlaneseq
  %v348 = vshrl.u32 %v347, 7
  %v349 = vsub.s32 0, %v348
  %v350 = vrot.slane %v334, %v349
  %v351 = vmul.f32 %v125, %v350
  %v352 = vlaneseq
  %v353 = vshrl.u32 %v352, 7
  %v354 = vsub.s32 1, %v353
  %v355 = vrot.slane %v334, %v354
  %v356 = vmul.f32 %v134, %v355
  %v357 = vadd.f32 %v351, %v356
  %v358 = vlaneseq
  %v359 = vshrl.u32 %v358, 7
  %v360 = vsub.s32 2, %v359
  %v361 = vrot.slane %v334, %v360
  %v362 = vmul.f32 %v144, %v361
  %v363 = vadd.f32 %v357, %v362
  %v364 = vlaneseq
  %v365 = vshrl.u32 %v364, 7
  %v366 = vsub.s32 3, %v365
  %v367 = vrot.slane %v334, %v366
  %v368 = vmul.f32 %v154, %v367
  %v369 = vadd.f32 %v363, %v368
  %370 = vst [vmem:[%s2] sm:$0xff] 0.0
  %371 = vst [vmem:[%s2 + $0x8] sm:$0xff] 0.0
  %372 = vst [vmem:[%s2] sm:$0xf] %v334
  %373 = vst [vmem:[%s2 + $0x4] sm:$0x3] %v369
  %vm374 = vcmask 27648
  %375 = vst.msk [vmem:[%s2 + $0x8] sm:$0xf] %vm374, %v346
  // Predicated region
  $region10: #{kalman_filter.1} parent=0 // pred_check
    _
  $region11: #{kalman_filter.1} parent=0 // pred_check_branch
    %377 = sbr.rel (0) target = $region13
  $region12: #{kalman_filter.1} parent=0 // pred_region
    _
  $region13: #{kalman_filter.1} parent=0 // pred_fallthru
    _
  // Predicated region
  $region14: #{kalman_filter.1} parent=0 // pred_check
    _
  $region15: #{kalman_filter.1} parent=0 // pred_check_branch
    %379 = sbr.rel (0) target = $region17
  $region16: #{kalman_filter.1} parent=0 // pred_region
    _
  $region17: #{kalman_filter.1} parent=0 // pred_fallthru
    _

</llo_original>
